<compile_context>
chip_gen: v7x
topology: tpu7x:2x2x1
jax: 0.10.0
libtpu: 0.0.40
codegen_flags: <defaults>
</compile_context>

<pallas_src>
import jax
import jax.numpy as jnp
from jax.experimental import pallas as pl
from jax.experimental.pallas import tpu as pltpu


def _round_up(x, m):
    return ((x + m - 1) // m) * m


def _gather_mlp_kernel(idx_ref, t_ref, b_ref, o_ref):
    """Fused gather + per-category Linear + sum for one row tile.

    idx_ref : (TN, C)     int32 category indices, per-category vocab offsets
                          already added (disjoint ranges within [0, V_total)).
    t_ref   : (V_pad, D)  f32 fused lookup table T = concat_c(emb_c @ W_c),
                          zero-padded rows beyond V_total.
    b_ref   : (1, D)      f32 pre-summed bias.
    o_ref   : (TN, D)     f32 output tile.
    """
    tn = idx_ref.shape[0]
    n_cat = idx_ref.shape[1]
    v_pad = t_ref.shape[0]

    # Multi-hot over the lane-dense vocab axis: m[n, v] = #{c : idx[n, c] == v}.
    lane_iota = jax.lax.broadcasted_iota(jnp.int32, (tn, v_pad), dimension=1)
    idx_all = idx_ref[...]                       # (TN, C), read once
    m = jnp.zeros((tn, v_pad), t_ref.dtype)
    for c in range(n_cat):                       # static, tiny (C == 3)
        idx_c = idx_all[:, c:c + 1]              # (TN, 1) static slice
        m = m + (lane_iota == idx_c).astype(t_ref.dtype)

    # One MXU pass: sum_c T[idx_c] == m @ T ; bias added in f32 on the VPU.
    out = jnp.dot(m, t_ref[...], preferred_element_type=jnp.float32)
    o_ref[...] = (out + b_ref[...]).astype(o_ref.dtype)


def trans_embedding_forward(idx_dict, params, cat_features, *, tile_n=1024):
    """Forward pass of TransEmbedding: sum_c Linear_c(Emb_c(idx_c))."""
    keys = [k for k in cat_features if k not in ("Labels", "Time")]
    C = len(keys)
    D = params["w"][0].shape[0]

    # TODO(synk): nn.Dropout(0.2) treated as identity (eval-mode semantics).

    # Fused lookup tables (frozen weights): T_c = emb_c @ W_c, concatenated
    # along the vocab axis; bias pre-summed.  All tiny (KBs) — one-time cost.
    t_cat = jnp.concatenate(
        [params["emb"][k] @ params["w"][i] for i, k in enumerate(keys)], axis=0)
    b_sum = sum(params["b"][i] for i in range(C)).reshape(1, D).astype(jnp.float32)

    vocabs = [params["emb"][k].shape[0] for k in keys]
    offsets = [0]
    for v in vocabs[:-1]:
        offsets.append(offsets[-1] + v)
    v_total = sum(vocabs)
    v_pad = _round_up(v_total, 128)          # lane-dense contraction axis
    t_pad = jnp.zeros((v_pad, D), jnp.float32).at[:v_total].set(
        t_cat.astype(jnp.float32))

    # Index matrix with per-category offsets (the only per-row input stream).
    idx = jnp.stack(
        [idx_dict[k].astype(jnp.int32) + offsets[i] for i, k in enumerate(keys)],
        axis=-1)                              # (N, C)
    N = idx.shape[0]

    # Row tiling: large tiles amortize grid-step overhead; N > tile_n gives
    # >= 2 "parallel" tiles so both v7x TensorCores get work.  Small N keeps a
    # single tightly padded tile (multiple of 8 sublanes only).
    if N <= tile_n:
        TN = _round_up(max(N, 1), 8)
    else:
        TN = min(tile_n, 2048)
    N_pad = _round_up(N, TN)
    idx_p = jnp.zeros((N_pad, C), jnp.int32).at[:N].set(idx)

    cost = pl.CostEstimate(
        flops=2 * N_pad * v_pad * D,
        transcendentals=0,
        bytes_accessed=(N_pad * C * 4          # indices in
                        + v_pad * D * 4        # resident table
                        + D * 4                # bias
                        + N_pad * D * 4))      # output

    out_pad = pl.pallas_call(
        _gather_mlp_kernel,
        out_shape=jax.ShapeDtypeStruct((N_pad, D), jnp.float32),
        grid_spec=pltpu.PrefetchScalarGridSpec(
            num_scalar_prefetch=0,
            grid=(N_pad // TN,),
            in_specs=[
                pl.BlockSpec((TN, C), lambda i: (i, 0)),      # per-tile indices
                pl.BlockSpec((v_pad, D), lambda i: (0, 0)),   # resident table
                pl.BlockSpec((1, D), lambda i: (0, 0)),       # resident bias
            ],
            out_specs=pl.BlockSpec((TN, D), lambda i: (i, 0)),
        ),
        compiler_params=pltpu.CompilerParams(
            dimension_semantics=("parallel",),   # row tiles shard across TCs
        ),
        cost_estimate=cost,
    )(idx_p, t_pad, b_sum)

    return out_pad[:N]


def reference_forward(idx_dict, params, cat_features):
    """Plain-JAX reference mirroring the PyTorch forward (dropout = identity)."""
    keys = [k for k in cat_features if k not in ("Labels", "Time")]
    output = 0.0
    for i, k in enumerate(keys):
        emb = jnp.take(params["emb"][k], idx_dict[k], axis=0)  # [N, D]
        output = output + emb @ params["w"][i] + params["b"][i]
    return output


def init_params(key, vocab_sizes, in_feats, n_mlp):
    """Deterministic synthetic parameter init (shapes match the PyTorch module)."""
    params = {"emb": {}, "w": {}, "b": {}}
    names = list(vocab_sizes.keys())
    all_keys = jax.random.split(key, len(names) + 2 * n_mlp)
    ki = 0
    for name in names:
        params["emb"][name] = jax.random.normal(
            all_keys[ki], (vocab_sizes[name], in_feats), dtype=jnp.float32
        ) * 0.1
        ki += 1
    for i in range(n_mlp):
        # W stored pre-transposed: y = x @ W + b (matches nn.Linear y = x @ weight.T + b)
        params["w"][i] = jax.random.normal(
            all_keys[ki], (in_feats, in_feats), dtype=jnp.float32
        ) * (1.0 / jnp.sqrt(in_feats))
        ki += 1
        params["b"][i] = jax.random.normal(
            all_keys[ki], (in_feats,), dtype=jnp.float32
        ) * 0.01
        ki += 1
    return params


if __name__ == "__main__":
    key = jax.random.PRNGKey(0)

    # Small shapes consistent with the module.
    N = 16          # number of rows (batch of transactions)
    in_feats = 32   # embedding / hidden dimension
    cat_features = ["card", "merchant", "transaction", "Time", "Labels"]
    vocab_sizes = {"card": 7, "merchant": 5, "transaction": 9}

    k_params, k_card, k_merch, k_trans = jax.random.split(key, 4)
    params = init_params(k_params, vocab_sizes, in_feats, n_mlp=len(cat_features))

    # df-like dict of categorical index columns (int32), as the PyTorch forward expects.
    idx_dict = {
        "card": jax.random.randint(k_card, (N,), 0, vocab_sizes["card"], dtype=jnp.int32),
        "merchant": jax.random.randint(k_merch, (N,), 0, vocab_sizes["merchant"], dtype=jnp.int32),
        "transaction": jax.random.randint(k_trans, (N,), 0, vocab_sizes["transaction"], dtype=jnp.int32),
    }

    out = trans_embedding_forward(idx_dict, params, cat_features)
    out = jax.block_until_ready(out)

    ref = reference_forward(idx_dict, params, cat_features)
    assert out.shape == (N, in_feats)
    assert jnp.allclose(out, ref, atol=1e-4, rtol=1e-4), "Pallas output mismatch vs reference"

    print("KERNEL_OK")
</pallas_src>

<mosaic_0001>
module attributes {stable_mosaic.version = 11 : i64} {
  func.func @_gather_mlp_kernel(%arg0: i32, %arg1: memref<16x3xi32, #tpu.memory_space<vmem>>, %arg2: memref<128x32xf32, #tpu.memory_space<vmem>>, %arg3: memref<1x32xf32, #tpu.memory_space<vmem>>, %arg4: memref<16x32xf32, #tpu.memory_space<vmem>>) attributes {dimension_semantics = [#tpu.dimension_semantics<parallel>], iteration_bounds = array<i64: 1>, scalar_prefetch = 0 : i64, scratch_operands = 0 : i64, tpu.core_type = #tpu.core_type<tc>, window_params = [{transform_indices = @transform_0, window_bounds = array<i64: 16, 3>}, {pipeline_mode = #tpu.pipeline_mode<synchronous>, transform_indices = @transform_1, window_bounds = array<i64: 128, 32>}, {pipeline_mode = #tpu.pipeline_mode<synchronous>, transform_indices = @transform_2, window_bounds = array<i64: 1, 32>}, {transform_indices = @transform_3, window_bounds = array<i64: 16, 32>}]} {
    %0 = tpu.iota {dimensions = array<i32: 1>} : vector<16x128xi32>
    %c0 = arith.constant 0 : index
    %c0_0 = arith.constant 0 : index
    %1 = vector.load %arg1[%c0, %c0_0] : memref<16x3xi32, #tpu.memory_space<vmem>>, vector<16x3xi32>
    %cst = arith.constant 0.000000e+00 : f32
    %2 = vector.broadcast %cst : f32 to vector<16x128xf32>
    %3 = vector.extract_strided_slice %1 {offsets = [0, 0], sizes = [16, 1], strides = [1, 1]} : vector<16x3xi32> to vector<16x1xi32>
    %4 = vector.broadcast %3 : vector<16x1xi32> to vector<16x128xi32>
    %5 = arith.cmpi eq, %0, %4 : vector<16x128xi32>
    %6 = arith.extui %5 : vector<16x128xi1> to vector<16x128xi32>
    %7 = arith.sitofp %6 : vector<16x128xi32> to vector<16x128xf32>
    %8 = arith.addf %2, %7 : vector<16x128xf32>
    %9 = vector.extract_strided_slice %1 {offsets = [0, 1], sizes = [16, 1], strides = [1, 1]} : vector<16x3xi32> to vector<16x1xi32>
    %10 = vector.broadcast %9 : vector<16x1xi32> to vector<16x128xi32>
    %11 = arith.cmpi eq, %0, %10 : vector<16x128xi32>
    %12 = arith.extui %11 : vector<16x128xi1> to vector<16x128xi32>
    %13 = arith.sitofp %12 : vector<16x128xi32> to vector<16x128xf32>
    %14 = arith.addf %8, %13 : vector<16x128xf32>
    %15 = vector.extract_strided_slice %1 {offsets = [0, 2], sizes = [16, 1], strides = [1, 1]} : vector<16x3xi32> to vector<16x1xi32>
    %16 = vector.broadcast %15 : vector<16x1xi32> to vector<16x128xi32>
    %17 = arith.cmpi eq, %0, %16 : vector<16x128xi32>
    %18 = arith.extui %17 : vector<16x128xi1> to vector<16x128xi32>
    %19 = arith.sitofp %18 : vector<16x128xi32> to vector<16x128xf32>
    %20 = arith.addf %14, %19 : vector<16x128xf32>
    %c0_1 = arith.constant 0 : index
    %c0_2 = arith.constant 0 : index
    %21 = vector.load %arg2[%c0_1, %c0_2] : memref<128x32xf32, #tpu.memory_space<vmem>>, vector<128x32xf32>
    %cst_3 = arith.constant dense<0.000000e+00> : vector<16x32xf32>
    %22 = tpu.matmul %20, %21, %cst_3 {dimension_numbers = #tpu.dot_dimension_numbers<[1], [0], [0], [1], [0, 0, 1, 1], [], []>} : vector<16x128xf32>, vector<128x32xf32>, vector<16x32xf32> -> vector<16x32xf32>
    %c0_4 = arith.constant 0 : index
    %c0_5 = arith.constant 0 : index
    %23 = vector.load %arg3[%c0_4, %c0_5] : memref<1x32xf32, #tpu.memory_space<vmem>>, vector<1x32xf32>
    %24 = vector.broadcast %23 : vector<1x32xf32> to vector<16x32xf32>
    %25 = arith.addf %22, %24 : vector<16x32xf32>
    %c0_6 = arith.constant 0 : index
    %c0_7 = arith.constant 0 : index
    %26 = vector.load %arg4[%c0_6, %c0_7] : memref<16x32xf32, #tpu.memory_space<vmem>>, vector<16x32xf32>
    tpu.vector_store %arg4[%c0_6, %c0_7], %25 {strides = array<i32>} : memref<16x32xf32, #tpu.memory_space<vmem>>, vector<16x32xf32>,
    return
  }
  func.func @transform_0(%arg0: i32) -> (i32, i32) {
    %c0_i32 = arith.constant 0 : i32
    %c0_i32_0 = arith.constant 0 : i32
    return %arg0, %c0_i32 : i32, i32
  }
  func.func @transform_1(%arg0: i32) -> (i32, i32) {
    %c0_i32 = arith.constant 0 : i32
    %c0_i32_0 = arith.constant 0 : i32
    %c0_i32_1 = arith.constant 0 : i32
    return %c0_i32, %c0_i32_0 : i32, i32
  }
  func.func @transform_2(%arg0: i32) -> (i32, i32) {
    %c0_i32 = arith.constant 0 : i32
    %c0_i32_0 = arith.constant 0 : i32
    %c0_i32_1 = arith.constant 0 : i32
    return %c0_i32, %c0_i32_0 : i32, i32
  }
  func.func @transform_3(%arg0: i32) -> (i32, i32) {
    %c0_i32 = arith.constant 0 : i32
    %c0_i32_0 = arith.constant 0 : i32
    return %arg0, %c0_i32 : i32, i32
  }
}

</mosaic_0001>

<llo_original>
// kernel: tpu_custom_call.1
$region0: #{tpu_custom_call.1}
  #allocation0 [shape = 'u32[]', space=smem, size = 0x4, offset = 0x4, fixed_abs, tag = 'smem constant byte address 0x4 - core index']
  #allocation1 [shape = 'u32[144,128]{1,0:T(1,128)}', space=vmem, size = 0x12000, scoped, tag = 'internal scratch']
  %s0 = inlined_call_operand.vmem [shape: s32[16,3], index: 0, kind: input, shape index: {}]
  %s1 = inlined_call_operand.vmem [shape: f32[128,32], index: 1, kind: input, shape index: {}]
  %s2 = inlined_call_operand.vmem [shape: f32[1,32], index: 2, kind: input, shape index: {}]
  %s3 = inlined_call_operand.hbm [shape: f32[16,32], index: 3, kind: output, shape index: {}]
  %s4 = sld [smem:[#allocation0]]
  $region22: #{tpu_custom_call.1} parent=0
    _
  %s6 = ssub.s32 1, %s4
  %s7 = scalar_select 0, %s6, %s4
  $region1: #{tpu_custom_call.1} parent=0
    #allocation2 [shape = 'u8[8192]{0}', space=vmem, size = 0x2000, scoped, tag = 'output window, operand 0, single buffered']
    #allocation3 [shape = 's32[1]{0}', space=sflag, size = 0x4, scoped, tag = 'scoped memory for tpu_custom_call.1']
    %8 = vsyncpa [#allocation3], 0
    // Predicated region
    $region2: #{tpu_custom_call.1} parent=1 // pred_check
      _
    $region3: #{tpu_custom_call.1} parent=1 // pred_check_branch
      %10 = sbr.rel (0) target = $region5
    $region4: #{tpu_custom_call.1} parent=1 // pred_region
      _
    $region5: #{tpu_custom_call.1} parent=1 // pred_fallthru
      _
    // Predicated region
    $region6: #{tpu_custom_call.1} parent=1 // pred_check
      _
    $region7: #{tpu_custom_call.1} parent=1 // pred_check_branch
      %12 = sbr.rel (0) target = $region9
    $region8: #{tpu_custom_call.1} parent=1 // pred_region
      _
    $region9: #{tpu_custom_call.1} parent=1 // pred_fallthru
      _
    // Predicated region
    $region10: #{tpu_custom_call.1} parent=1 // pred_check
      _
    $region11: #{tpu_custom_call.1} parent=1 // pred_check_branch
      %14 = sbr.rel (0) target = $region13
    $region12: #{tpu_custom_call.1} parent=1 // pred_region
      _
    $region13: #{tpu_custom_call.1} parent=1 // pred_fallthru
      _
    %v15 = vlaneseq
    %v16 = vand.u32 %v15, 127
    %v17 = vld [vmem:[%s0] sm:$0xff]
    %v18 = vld [vmem:[%s0 + $0x8] sm:$0xff]
    %19 = vset.pattern.permute.xlu0 0
    %20 = vperm.xlu0 %19, %v17
    %v21 = vpop.permute.xlu0 %20
    %22 = vset.pattern.permute.xlu0 0
    %23 = vperm.xlu0 %22, %v18
    %v24 = vpop.permute.xlu0 %23
    %vm25 = vcmp.eq.s32.totalorder %v16, %v21
    %vm26 = vcmp.eq.s32.totalorder %v16, %v24
    %v27 = vsel %vm25, 1, 0
    %v28 = vsel %vm26, 1, 0
    %v29 = vcvt.s32.f32 %v27
    %v30 = vcvt.s32.f32 %v28
    %v31 = vadd.f32 %v29, 0.0
    %v32 = vadd.f32 %v30, 0.0
    %33 = vset.pattern.permute.xlu0 1
    %34 = vperm.xlu0 %33, %v17
    %v35 = vpop.permute.xlu0 %34
    %36 = vset.pattern.permute.xlu0 1
    %37 = vperm.xlu0 %36, %v18
    %v38 = vpop.permute.xlu0 %37
    %vm39 = vcmp.eq.s32.totalorder %v16, %v35
    %vm40 = vcmp.eq.s32.totalorder %v16, %v38
    %v41 = vsel %vm39, 1, 0
    %v42 = vsel %vm40, 1, 0
    %v43 = vcvt.s32.f32 %v41
    %v44 = vcvt.s32.f32 %v42
    %v45 = vadd.f32 %v31, %v43
    %v46 = vadd.f32 %v32, %v44
    %47 = vset.pattern.permute.xlu0 2
    %48 = vperm.xlu0 %47, %v17
    %v49 = vpop.permute.xlu0 %48
    %50 = vset.pattern.permute.xlu0 2
    %51 = vperm.xlu0 %50, %v18
    %v52 = vpop.permute.xlu0 %51
    %vm53 = vcmp.eq.s32.totalorder %v16, %v49
    %vm54 = vcmp.eq.s32.totalorder %v16, %v52
    %v55 = vsel %vm53, 1, 0
    %v56 = vsel %vm54, 1, 0
    %v57 = vcvt.s32.f32 %v55
    %v58 = vcvt.s32.f32 %v56
    %v59 = vadd.f32 %v45, %v57
    %v60 = vadd.f32 %v46, %v58
    %v61 = vld [vmem:[%s1] sm:$0xff]
    %v62 = vld [vmem:[%s1 + $0x8] sm:$0xff]
    %v63 = vld [vmem:[%s1 + $0x10] sm:$0xff]
    %v64 = vld [vmem:[%s1 + $0x18] sm:$0xff]
    %v65 = vld [vmem:[%s1 + $0x20] sm:$0xff]
    %v66 = vld [vmem:[%s1 + $0x28] sm:$0xff]
    %v67 = vld [vmem:[%s1 + $0x30] sm:$0xff]
    %v68 = vld [vmem:[%s1 + $0x38] sm:$0xff]
    %v69 = vld [vmem:[%s1 + $0x40] sm:$0xff]
    %v70 = vld [vmem:[%s1 + $0x48] sm:$0xff]
    %v71 = vld [vmem:[%s1 + $0x50] sm:$0xff]
    %v72 = vld [vmem:[%s1 + $0x58] sm:$0xff]
    %v73 = vld [vmem:[%s1 + $0x60] sm:$0xff]
    %v74 = vld [vmem:[%s1 + $0x68] sm:$0xff]
    %v75 = vld [vmem:[%s1 + $0x70] sm:$0xff]
    %v76 = vld [vmem:[%s1 + $0x78] sm:$0xff]
    %v77 = vld [vmem:[%s2] sm:$0x1]
    %v79 = vlaneseq
    %v80 = vshrl.u32 %v79, 7
    %v81 = vsub.s32 0, %v80
    %v82 = vrot.slane %v77, %v81
    %84 = vmatprep.subr.mxu0 0.0
    %85 = vmatpush1.msra.mxu0 %v61
    %86 = vmatprep.subr.mxu0 0.0
    %87 = vmatpush1.msra.mxu0 %v62
    %88 = vmatprep.subr.mxu0 0.0
    %89 = vmatpush1.msra.mxu0 %v63
    %90 = vmatprep.subr.mxu0 0.0
    %91 = vmatpush1.msra.mxu0 %v64
    %92 = vmatprep.subr.mxu0 0.0
    %93 = vmatpush1.msra.mxu0 %v65
    %94 = vmatprep.subr.mxu0 0.0
    %95 = vmatpush1.msra.mxu0 %v66
    %96 = vmatprep.subr.mxu0 0.0
    %97 = vmatpush1.msra.mxu0 %v67
    %98 = vmatprep.subr.mxu0 0.0
    %99 = vmatpush1.msra.mxu0 %v68
    %100 = vmatprep.subr.mxu0 0.0
    %101 = vmatpush1.msra.mxu0 %v69
    %102 = vmatprep.subr.mxu0 0.0
    %103 = vmatpush1.msra.mxu0 %v70
    %104 = vmatprep.subr.mxu0 0.0
    %105 = vmatpush1.msra.mxu0 %v71
    %106 = vmatprep.subr.mxu0 0.0
    %107 = vmatpush1.msra.mxu0 %v72
    %108 = vmatprep.subr.mxu0 0.0
    %109 = vmatpush1.msra.mxu0 %v73
    %110 = vmatprep.subr.mxu0 0.0
    %111 = vmatpush1.msra.mxu0 %v74
    %112 = vmatprep.subr.mxu0 0.0
    %113 = vmatpush1.msra.mxu0 %v75
    %114 = vmatprep.subr.mxu0 0.0
    %115 = vmatpush1.msra.mxu0 %v76
    %116 = vmatprep.subr.mxu0 0.0
    %117 = vmatpush1.msra.mxu0 0.0
    %118 = vmatprep.subr.mxu0 0.0
    %119 = vmatpush1.msra.mxu0 0.0
    %120 = vmatprep.subr.mxu0 0.0
    %121 = vmatpush1.msra.mxu0 0.0
    %122 = vmatprep.subr.mxu0 0.0
    %123 = vmatpush1.msra.mxu0 0.0
    %124 = vmatprep.subr.mxu0 0.0
    %125 = vmatpush1.msra.mxu0 0.0
    %126 = vmatprep.subr.mxu0 0.0
    %127 = vmatpush1.msra.mxu0 0.0
    %128 = vmatprep.subr.mxu0 0.0
    %129 = vmatpush1.msra.mxu0 0.0
    %130 = vmatprep.subr.mxu0 0.0
    %131 = vmatpush1.msra.mxu0 0.0
    %132 = vmatprep.subr.mxu0 0.0
    %133 = vmatpush1.msra.mxu0 0.0
    %134 = vmatprep.subr.mxu0 0.0
    %135 = vmatpush1.msra.mxu0 0.0
    %136 = vmatprep.subr.mxu0 0.0
    %137 = vmatpush1.msra.mxu0 0.0
    %138 = vmatprep.subr.mxu0 0.0
    %139 = vmatpush1.msra.mxu0 0.0
    %140 = vmatprep.subr.mxu0 0.0
    %141 = vmatpush1.msra.mxu0 0.0
    %142 = vmatprep.subr.mxu0 0.0
    %143 = vmatpush1.msra.mxu0 0.0
    %144 = vmatprep.subr.mxu0 0.0
    %145 = vmatpush1.msra.mxu0 0.0
    %146 = vmatprep.subr.mxu0 0.0
    %147 = vmatpush1.msra.mxu0 0.0
    %148 = vmatprep.mubr.f32.mxu0 0.0
    %149 = vmatmul.mubr.f32.gmra.mrb[0].mxu0 %v59
    %v150 = vpop.f32.mrb[0].mxu0
    %v151 = vadd.f32 %v82, %v150
    %v152 = vpop.f32.mrb[0].mxu0
    %153 = vmatprep.mubr.f32.mxu0 0.0
    %154 = vmatmul.mubr.f32.gmra.mrb[0].mxu0 %v60
    %v155 = vpop.f32.mrb[0].mxu0
    %v156 = vadd.f32 %v82, %v155
    %v157 = vpop.f32.mrb[0].mxu0
    %158 = vdwg.mxu0
    %vm159 = vcmask 261120
    %160 = vst.msk [vmem:[#allocation2] sm:$0xff] %vm159, %v151
    %161 = vst.msk [vmem:[#allocation2 + $0x8] sm:$0xff] %vm159, %v156
    // Predicated region
    $region14: #{tpu_custom_call.1} parent=1 // pred_check
      _
    $region15: #{tpu_custom_call.1} parent=1 // pred_check_branch
      %163 = sbr.rel (0) target = $region17
    $region16: #{tpu_custom_call.1} parent=1 // pred_region
      %s165 = ssub.s32 256, 256
      %166 = vsyncadd [#allocation3], %s165
      %s167 = sshll.u32 [#allocation2], 4
      %s168 = int_to_ptr.vmem [resolvable:$true] %s167
      %173 = dma.vmem_to_hbm [thread:$0]  %s168, 256, %s3, [#allocation3], 128, 128, 8
    $region17: #{tpu_custom_call.1} parent=1 // pred_fallthru
      _
    // Predicated region
    $region18: #{tpu_custom_call.1} parent=1 // pred_check
      _
    $region19: #{tpu_custom_call.1} parent=1 // pred_check_branch
      %175 = sbr.rel (0) target = $region21
    $region20: #{tpu_custom_call.1} parent=1 // pred_region
      %176 = dma.done [#allocation3], 256
    $region21: #{tpu_custom_call.1} parent=1 // pred_fallthru
      _
    %177 = vsyncpa [#allocation3], 1

</llo_original>
